<compile_context>
chip_gen: v7x
topology: tpu7x:2x2x1
jax: 0.10.0
libtpu: 0.0.40
codegen_flags: <defaults>
</compile_context>

<pallas_src>
import functools

import numpy as np
import jax
import jax.numpy as jnp
from jax import lax
from jax.experimental import pallas as pl
from jax.experimental.pallas import tpu as pltpu


# ----------------------------------------------------------------------------
# Residue constants (AlphaFold atom37 conventions), built deterministically.
# ----------------------------------------------------------------------------
ATOM_TYPES = [
    'N', 'CA', 'C', 'CB', 'O', 'CG', 'CG1', 'CG2', 'OG', 'OG1', 'SG', 'CD',
    'CD1', 'CD2', 'ND1', 'ND2', 'OD1', 'OD2', 'SD', 'CE', 'CE1', 'CE2', 'CE3',
    'NE', 'NE1', 'NE2', 'OE1', 'OE2', 'CH2', 'NH1', 'NH2', 'OH', 'CZ', 'CZ2',
    'CZ3', 'NZ', 'OXT',
]
ATOM_ORDER = {name: i for i, name in enumerate(ATOM_TYPES)}

RESTYPES_1 = list('ARNDCQEGHILKMFPSTWYV')   # 20 standard residues, + UNK row 20
RESTYPE_1TO3 = {
    'A': 'ALA', 'R': 'ARG', 'N': 'ASN', 'D': 'ASP', 'C': 'CYS', 'Q': 'GLN',
    'E': 'GLU', 'G': 'GLY', 'H': 'HIS', 'I': 'ILE', 'L': 'LEU', 'K': 'LYS',
    'M': 'MET', 'F': 'PHE', 'P': 'PRO', 'S': 'SER', 'T': 'THR', 'W': 'TRP',
    'Y': 'TYR', 'V': 'VAL',
}
CHI_ANGLES_ATOMS = {
    'ALA': [],
    'ARG': [['N', 'CA', 'CB', 'CG'], ['CA', 'CB', 'CG', 'CD'],
            ['CB', 'CG', 'CD', 'NE'], ['CG', 'CD', 'NE', 'CZ']],
    'ASN': [['N', 'CA', 'CB', 'CG'], ['CA', 'CB', 'CG', 'OD1']],
    'ASP': [['N', 'CA', 'CB', 'CG'], ['CA', 'CB', 'CG', 'OD1']],
    'CYS': [['N', 'CA', 'CB', 'SG']],
    'GLN': [['N', 'CA', 'CB', 'CG'], ['CA', 'CB', 'CG', 'CD'],
            ['CB', 'CG', 'CD', 'OE1']],
    'GLU': [['N', 'CA', 'CB', 'CG'], ['CA', 'CB', 'CG', 'CD'],
            ['CB', 'CG', 'CD', 'OE1']],
    'GLY': [],
    'HIS': [['N', 'CA', 'CB', 'CG'], ['CA', 'CB', 'CG', 'ND1']],
    'ILE': [['N', 'CA', 'CB', 'CG1'], ['CA', 'CB', 'CG1', 'CD1']],
    'LEU': [['N', 'CA', 'CB', 'CG'], ['CA', 'CB', 'CG', 'CD1']],
    'LYS': [['N', 'CA', 'CB', 'CG'], ['CA', 'CB', 'CG', 'CD'],
            ['CB', 'CG', 'CD', 'CE'], ['CG', 'CD', 'CE', 'NZ']],
    'MET': [['N', 'CA', 'CB', 'CG'], ['CA', 'CB', 'CG', 'SD'],
            ['CB', 'CG', 'SD', 'CE']],
    'PHE': [['N', 'CA', 'CB', 'CG'], ['CA', 'CB', 'CG', 'CD1']],
    'PRO': [['N', 'CA', 'CB', 'CG'], ['CA', 'CB', 'CG', 'CD']],
    'SER': [['N', 'CA', 'CB', 'OG']],
    'THR': [['N', 'CA', 'CB', 'OG1']],
    'TRP': [['N', 'CA', 'CB', 'CG'], ['CA', 'CB', 'CG', 'CD1']],
    'TYR': [['N', 'CA', 'CB', 'CG'], ['CA', 'CB', 'CG', 'CD1']],
    'VAL': [['N', 'CA', 'CB', 'CG1']],
}
CHI_PI_PERIODIC_3 = {'ASP': [0, 1, 0, 0], 'GLU': [0, 0, 1, 0],
                     'PHE': [0, 1, 0, 0], 'TYR': [0, 1, 0, 0]}

_chi_mask, _chi_pi, _chi_idx = [], [], []
for r1 in RESTYPES_1:
    r3 = RESTYPE_1TO3[r1]
    chis = CHI_ANGLES_ATOMS[r3]
    _chi_mask.append([1.0] * len(chis) + [0.0] * (4 - len(chis)))
    _chi_pi.append([float(v) for v in CHI_PI_PERIODIC_3.get(r3, [0, 0, 0, 0])])
    idx = [[ATOM_ORDER[a] for a in chi] for chi in chis]
    idx += [[0, 0, 0, 0]] * (4 - len(chis))
    _chi_idx.append(idx)
# UNK row
_chi_mask.append([0.0] * 4)
_chi_pi.append([0.0] * 4)
_chi_idx.append([[0, 0, 0, 0]] * 4)

CHI_ANGLES_MASK = jnp.asarray(_chi_mask, dtype=jnp.float32)            # [21, 4]
CHI_PI_PERIODIC = jnp.asarray(_chi_pi, dtype=jnp.float32)              # [21, 4]
# One-hot selector over the 37-atom axis: [21 restype, 4 chi, 4 atom, 37]
CHI_ATOM_ONEHOT = jnp.asarray(
    np.eye(37, dtype=np.float32)[np.asarray(_chi_idx, dtype=np.int32)])

_LANES = 128
_SUB = 8          # sublanes per in-kernel chunk (one f32 vreg)


# ----------------------------------------------------------------------------
# Pallas kernel: lane-dense dihedral sin/cos + masked loss partial sums.
# ----------------------------------------------------------------------------
def _sidechain_loss_kernel(atoms_ref, sm_ref, ax_ref, ay_ref, part_ref, *,
                           n_chunks):
    # atoms_ref : [12, br, 128] f32  (atom_in_dihedral*3 + xyz) coord planes
    # sm_ref    : [br, 128] f32     signed mask = chi*atom mask * flip, {-1,0,+1}
    # ax/ay_ref : [br, 128] f32     unnormalized prediction (sin, cos) comps
    #                               (padding uses ax=1, ay=0 -> zero norm term)
    # part_ref  : [1, 3, 8, 128] f32 per-block partial sums:
    #             [0]=masked min-diff sum, [1]=mask count, [2]=(|a|-1)^2 sum
    eps = 1e-8
    part_ref[...] = jnp.zeros_like(part_ref)

    @pl.loop(0, n_chunks)
    def _chunk(j):
        rows = pl.ds(pl.multiple_of(j * _SUB, _SUB), _SUB)

        def atom(i):
            return (atoms_ref[3 * i + 0, rows, :],
                    atoms_ref[3 * i + 1, rows, :],
                    atoms_ref[3 * i + 2, rows, :])

        def sub(a, b):
            return tuple(x - y for x, y in zip(a, b))

        def scale(a, s):
            return tuple(x * s for x in a)

        def dot3(a, b):
            return a[0] * b[0] + a[1] * b[1] + a[2] * b[2]

        # Rigid.from_3_points(p_neg_x_axis=p1, origin=p2, p_xy_plane=p0), eps=1e-8
        p1 = atom(1)
        p2 = atom(2)
        e0 = sub(p2, p1)                                    # p1 dead
        e0 = scale(e0, lax.rsqrt(dot3(e0, e0) + eps))       # EUP rsqrt
        v = sub(atom(0), p2)
        v = sub(v, scale(e0, dot3(e0, v)))
        e1 = scale(v, lax.rsqrt(dot3(v, v) + eps))
        d = sub(atom(3), p2)                                # p2 dead
        cos_raw = dot3(e1, d)
        e2 = (e0[1] * e1[2] - e0[2] * e1[1],                # e0 x e1
              e0[2] * e1[0] - e0[0] * e1[2],
              e0[0] * e1[1] - e0[1] * e1[0])
        sin_raw = dot3(e2, d)

        # Folded GT normalization:  raw -> /sqrt(s2+1e-9) -> /(||.||+1e-8)
        s2 = sin_raw * sin_raw + cos_raw * cos_raw
        inv_denom = lax.rsqrt(s2 + 1e-9)                    # EUP
        n_gt = jnp.sqrt(s2) * inv_denom                     # norm after step 1
        c = inv_denom * pl.reciprocal(n_gt + eps)           # exact recip (EUP)
        gt_sin = sin_raw * c
        gt_cos = cos_raw * c

        # not-nan mask on the normalized GT (input NaN fidelity)
        not_nan = jnp.where(jnp.isnan(gt_sin) | jnp.isnan(gt_cos), 0.0, 1.0)
        sm = sm_ref[rows, :]
        mask = jnp.abs(sm) * not_nan
        flip = jnp.where(sm < 0.0, -1.0, 1.0)               # pi-periodic sign

        # prediction normalization: safe_norm = sqrt(1e-8 + sum(x^2))
        ax = ax_ref[rows, :]
        ay = ay_ref[rows, :]
        norm_a = jnp.sqrt(eps + ax * ax + ay * ay)
        inv_na = pl.reciprocal(norm_a)                      # exact recip (EUP)
        axn = ax * inv_na
        ayn = ay * inv_na

        # min of squared safe-norms (sqrt-then-square removed);
        # the pi-periodic alt GT is a pure +-1 sign flip of the normalized GT.
        dgt = eps + (axn - gt_sin) ** 2 + (ayn - gt_cos) ** 2
        dalt = eps + (axn - flip * gt_sin) ** 2 + (ayn - flip * gt_cos) ** 2
        min_diff = jnp.minimum(dgt, dalt)

        part_ref[0, 0, :, :] = part_ref[0, 0, :, :] + jnp.where(
            mask > 0.0, min_diff, 0.0)
        part_ref[0, 1, :, :] = part_ref[0, 1, :, :] + mask
        part_ref[0, 2, :, :] = part_ref[0, 2, :, :] + (norm_a - 1.0) ** 2


# ----------------------------------------------------------------------------
# Wrapper: one-hot MXU gathers (no XLA advanced indexing) + pallas_call.
# ----------------------------------------------------------------------------
@functools.partial(jax.jit, static_argnames=("block_rows",))
def side_chain_dihedral_loss(sequence, unnormalized_angles, native_coords,
                             atom_mask, block_rows=512):
    """sequence [B,S] int, unnormalized_angles [B,S,no_angles,2] f32,
    native_coords [B,S,37,3] f32, atom_mask [B,S,37] bool
    -> (l_torsion, l_angle_norm)."""
    B, S = sequence.shape
    M = B * S * 4                     # number of (residue, chi) elements
    seq = sequence.astype(jnp.int32)
    coords = native_coords.astype(jnp.float32)
    amask_f = atom_mask.astype(jnp.float32)

    # --- one-hot contractions replace the slow dynamic gathers ----------------
    seq_oh = jax.nn.one_hot(seq, 21, dtype=jnp.float32)               # [B,S,21]
    sel = jnp.einsum('bsr,rcaw->bscaw', seq_oh, CHI_ATOM_ONEHOT)      # [B,S,4,4,37]

    # 12 coordinate planes emitted directly in the kernel's lane order
    # [atom*3+xyz, B, S, chi]; HIGHEST precision so coords stay f32-exact.
    atoms12 = jnp.einsum('bscaw,bswx->axbsc', sel, coords,
                         precision=lax.Precision.HIGHEST).reshape(12, M)

    # atom-presence: all 4 dihedral atoms must exist (count == 4)
    n_present = jnp.einsum('bscaw,bsw->bsc', sel, amask_f)            # [B,S,4]
    amask4 = (n_present > 3.5).astype(jnp.float32)

    chi_mask = jnp.einsum('bsr,rc->bsc', seq_oh, CHI_ANGLES_MASK)     # {0,1}
    chi_pi = jnp.einsum('bsr,rc->bsc', seq_oh, CHI_PI_PERIODIC)       # {0,1}
    # merged signed plane: mask * flip in {-1, 0, +1}
    sm = (chi_mask * amask4 * (1.0 - 2.0 * chi_pi)).reshape(M)

    a = unnormalized_angles[..., -4:, :].astype(jnp.float32)
    ax = a[..., 0].reshape(M)
    ay = a[..., 1].reshape(M)

    # --- lane-dense padding to [rows_total, 128] with rows_total % br == 0 ----
    assert block_rows % _SUB == 0
    rows_needed = -(-M // _LANES)
    if rows_needed > block_rows:
        br = block_rows
    else:
        br = max(_SUB, -(-rows_needed // _SUB) * _SUB)
    rows_total = -(-rows_needed // br) * br
    pad = rows_total * _LANES - M
    num_blocks = rows_total // br
    n_chunks = br // _SUB

    def plane(x, val):
        return jnp.pad(x, (0, pad), constant_values=val).reshape(rows_total,
                                                                 _LANES)

    sm_p = plane(sm, 0.0)     # pad -> mask 0 -> excluded from l_torsion
    ax_p = plane(ax, 1.0)     # pad -> sqrt(1e-8 + 1) == 1 in f32 -> 0 term
    ay_p = plane(ay, 0.0)
    atoms_p = jnp.pad(atoms12, ((0, 0), (0, pad))).reshape(
        12, rows_total, _LANES)

    kernel = functools.partial(_sidechain_loss_kernel, n_chunks=n_chunks)

    # double-buffered inputs: (12 + 3) planes * br * 128 * 4 B
    per_step_bytes = 15 * br * _LANES * 4 + 3 * 8 * _LANES * 4
    vmem_limit = int(min(64 << 20, max(32 << 20, 3 * per_step_bytes)))

    grid_spec = pltpu.PrefetchScalarGridSpec(
        num_scalar_prefetch=0,
        grid=(num_blocks,),
        in_specs=[
            pl.BlockSpec((12, br, _LANES), lambda i: (0, i, 0)),
            pl.BlockSpec((br, _LANES), lambda i: (i, 0)),
            pl.BlockSpec((br, _LANES), lambda i: (i, 0)),
            pl.BlockSpec((br, _LANES), lambda i: (i, 0)),
        ],
        out_specs=pl.BlockSpec((1, 3, 8, _LANES), lambda i: (i, 0, 0, 0)),
    )

    partials = pl.pallas_call(
        kernel,
        out_shape=jax.ShapeDtypeStruct((num_blocks, 3, 8, _LANES), jnp.float32),
        grid_spec=grid_spec,
        compiler_params=pltpu.CompilerParams(
            dimension_semantics=("parallel",),
            vmem_limit_bytes=vmem_limit),
    )(atoms_p, sm_p, ax_p, ay_p)

    num = jnp.sum(partials[:, 0])
    den = jnp.sum(partials[:, 1])
    ang = jnp.sum(partials[:, 2])
    # NB: reproduces torch.mean over an empty masked selection (NaN) when the
    # chi mask is empty, to stay faithful to the reference.
    l_torsion = num / den
    l_angle_norm = ang * (1.0 / float(M))
    return l_torsion, l_angle_norm


if __name__ == "__main__":
    key = jax.random.PRNGKey(0)
    k1, k2, k3, k4 = jax.random.split(key, 4)

    B, S, NO_ANGLES = 2, 8, 7
    sequence = jax.random.randint(k1, (B, S), 0, 20)
    native_coords = 3.0 * jax.random.normal(k2, (B, S, 37, 3), dtype=jnp.float32)
    atom_mask = jax.random.bernoulli(k3, 0.9, (B, S, 37))
    unnormalized_angles = jax.random.normal(k4, (B, S, NO_ANGLES, 2),
                                            dtype=jnp.float32)

    l_torsion, l_angle_norm = side_chain_dihedral_loss(
        sequence, unnormalized_angles, native_coords, atom_mask)
    jax.block_until_ready((l_torsion, l_angle_norm))
    print("KERNEL_OK")
</pallas_src>

<mosaic_0001>
module attributes {stable_mosaic.version = 11 : i64} {
  func.func @_sidechain_loss_kernel(%arg0: i32, %arg1: memref<12x8x128xf32, #tpu.memory_space<vmem>>, %arg2: memref<8x128xf32, #tpu.memory_space<vmem>>, %arg3: memref<8x128xf32, #tpu.memory_space<vmem>>, %arg4: memref<8x128xf32, #tpu.memory_space<vmem>>, %arg5: memref<1x3x8x128xf32, #tpu.memory_space<vmem>>) attributes {dimension_semantics = [#tpu.dimension_semantics<parallel>], iteration_bounds = array<i64: 1>, scalar_prefetch = 0 : i64, scratch_operands = 0 : i64, tpu.core_type = #tpu.core_type<tc>, window_params = [{transform_indices = @transform_0, window_bounds = array<i64: 12, 8, 128>}, {transform_indices = @transform_1, window_bounds = array<i64: 8, 128>}, {transform_indices = @transform_2, window_bounds = array<i64: 8, 128>}, {transform_indices = @transform_3, window_bounds = array<i64: 8, 128>}, {transform_indices = @transform_4, window_bounds = array<i64: 1, 3, 8, 128>}]} {
    %cst = arith.constant 0.000000e+00 : f32
    %0 = vector.broadcast %cst : f32 to vector<1x3x8x128xf32>
    %c0 = arith.constant 0 : index
    %c0_0 = arith.constant 0 : index
    %c0_1 = arith.constant 0 : index
    %c0_2 = arith.constant 0 : index
    %1 = vector.load %arg5[%c0, %c0_0, %c0_1, %c0_2] : memref<1x3x8x128xf32, #tpu.memory_space<vmem>>, vector<1x3x8x128xf32>
    tpu.vector_store %arg5[%c0, %c0_0, %c0_1, %c0_2], %0 {strides = array<i32>} : memref<1x3x8x128xf32, #tpu.memory_space<vmem>>, vector<1x3x8x128xf32>,
    %c0_i32 = arith.constant 0 : i32
    %c1_i32 = arith.constant 1 : i32
    %2 = arith.muli %c0_i32, %c1_i32 : i32
    %c0_i32_3 = arith.constant 0 : i32
    %3 = arith.addi %c0_i32_3, %2 : i32
    %c8_i32 = arith.constant 8 : i32
    %4 = arith.muli %3, %c8_i32 : i32
    %5 = tpu.assume_multiple %4, 8 : i32
    %c3 = arith.constant 3 : index
    %6 = arith.index_cast %5 : i32 to index
    %c0_4 = arith.constant 0 : index
    %7 = vector.load %arg1[%c3, %6, %c0_4] : memref<12x8x128xf32, #tpu.memory_space<vmem>>, vector<1x8x128xf32>
    %8 = vector.shape_cast %7 : vector<1x8x128xf32> to vector<8x128xf32>
    %c4 = arith.constant 4 : index
    %9 = arith.index_cast %5 : i32 to index
    %c0_5 = arith.constant 0 : index
    %10 = vector.load %arg1[%c4, %9, %c0_5] : memref<12x8x128xf32, #tpu.memory_space<vmem>>, vector<1x8x128xf32>
    %11 = vector.shape_cast %10 : vector<1x8x128xf32> to vector<8x128xf32>
    %c5 = arith.constant 5 : index
    %12 = arith.index_cast %5 : i32 to index
    %c0_6 = arith.constant 0 : index
    %13 = vector.load %arg1[%c5, %12, %c0_6] : memref<12x8x128xf32, #tpu.memory_space<vmem>>, vector<1x8x128xf32>
    %14 = vector.shape_cast %13 : vector<1x8x128xf32> to vector<8x128xf32>
    %c6 = arith.constant 6 : index
    %15 = arith.index_cast %5 : i32 to index
    %c0_7 = arith.constant 0 : index
    %16 = vector.load %arg1[%c6, %15, %c0_7] : memref<12x8x128xf32, #tpu.memory_space<vmem>>, vector<1x8x128xf32>
    %17 = vector.shape_cast %16 : vector<1x8x128xf32> to vector<8x128xf32>
    %c7 = arith.constant 7 : index
    %18 = arith.index_cast %5 : i32 to index
    %c0_8 = arith.constant 0 : index
    %19 = vector.load %arg1[%c7, %18, %c0_8] : memref<12x8x128xf32, #tpu.memory_space<vmem>>, vector<1x8x128xf32>
    %20 = vector.shape_cast %19 : vector<1x8x128xf32> to vector<8x128xf32>
    %c8 = arith.constant 8 : index
    %21 = arith.index_cast %5 : i32 to index
    %c0_9 = arith.constant 0 : index
    %22 = vector.load %arg1[%c8, %21, %c0_9] : memref<12x8x128xf32, #tpu.memory_space<vmem>>, vector<1x8x128xf32>
    %23 = vector.shape_cast %22 : vector<1x8x128xf32> to vector<8x128xf32>
    %24 = arith.subf %17, %8 : vector<8x128xf32>
    %25 = arith.subf %20, %11 : vector<8x128xf32>
    %26 = arith.subf %23, %14 : vector<8x128xf32>
    %27 = arith.mulf %24, %24 : vector<8x128xf32>
    %28 = arith.mulf %25, %25 : vector<8x128xf32>
    %29 = arith.addf %27, %28 : vector<8x128xf32>
    %30 = arith.mulf %26, %26 : vector<8x128xf32>
    %31 = arith.addf %29, %30 : vector<8x128xf32>
    %cst_10 = arith.constant 9.99999993E-9 : f32
    %32 = vector.broadcast %cst_10 : f32 to vector<8x128xf32>
    %33 = arith.addf %31, %32 : vector<8x128xf32>
    %34 = math.rsqrt %33 : vector<8x128xf32>
    %35 = arith.mulf %24, %34 : vector<8x128xf32>
    %36 = arith.mulf %25, %34 : vector<8x128xf32>
    %37 = arith.mulf %26, %34 : vector<8x128xf32>
    %c0_11 = arith.constant 0 : index
    %38 = arith.index_cast %5 : i32 to index
    %c0_12 = arith.constant 0 : index
    %39 = vector.load %arg1[%c0_11, %38, %c0_12] : memref<12x8x128xf32, #tpu.memory_space<vmem>>, vector<1x8x128xf32>
    %40 = vector.shape_cast %39 : vector<1x8x128xf32> to vector<8x128xf32>
    %c1 = arith.constant 1 : index
    %41 = arith.index_cast %5 : i32 to index
    %c0_13 = arith.constant 0 : index
    %42 = vector.load %arg1[%c1, %41, %c0_13] : memref<12x8x128xf32, #tpu.memory_space<vmem>>, vector<1x8x128xf32>
    %43 = vector.shape_cast %42 : vector<1x8x128xf32> to vector<8x128xf32>
    %c2 = arith.constant 2 : index
    %44 = arith.index_cast %5 : i32 to index
    %c0_14 = arith.constant 0 : index
    %45 = vector.load %arg1[%c2, %44, %c0_14] : memref<12x8x128xf32, #tpu.memory_space<vmem>>, vector<1x8x128xf32>
    %46 = vector.shape_cast %45 : vector<1x8x128xf32> to vector<8x128xf32>
    %47 = arith.subf %40, %17 : vector<8x128xf32>
    %48 = arith.subf %43, %20 : vector<8x128xf32>
    %49 = arith.subf %46, %23 : vector<8x128xf32>
    %50 = arith.mulf %35, %47 : vector<8x128xf32>
    %51 = arith.mulf %36, %48 : vector<8x128xf32>
    %52 = arith.addf %50, %51 : vector<8x128xf32>
    %53 = arith.mulf %37, %49 : vector<8x128xf32>
    %54 = arith.addf %52, %53 : vector<8x128xf32>
    %55 = arith.mulf %35, %54 : vector<8x128xf32>
    %56 = arith.mulf %36, %54 : vector<8x128xf32>
    %57 = arith.mulf %37, %54 : vector<8x128xf32>
    %58 = arith.subf %47, %55 : vector<8x128xf32>
    %59 = arith.subf %48, %56 : vector<8x128xf32>
    %60 = arith.subf %49, %57 : vector<8x128xf32>
    %61 = arith.mulf %58, %58 : vector<8x128xf32>
    %62 = arith.mulf %59, %59 : vector<8x128xf32>
    %63 = arith.addf %61, %62 : vector<8x128xf32>
    %64 = arith.mulf %60, %60 : vector<8x128xf32>
    %65 = arith.addf %63, %64 : vector<8x128xf32>
    %cst_15 = arith.constant 9.99999993E-9 : f32
    %66 = vector.broadcast %cst_15 : f32 to vector<8x128xf32>
    %67 = arith.addf %65, %66 : vector<8x128xf32>
    %68 = math.rsqrt %67 : vector<8x128xf32>
    %69 = arith.mulf %58, %68 : vector<8x128xf32>
    %70 = arith.mulf %59, %68 : vector<8x128xf32>
    %71 = arith.mulf %60, %68 : vector<8x128xf32>
    %c9 = arith.constant 9 : index
    %72 = arith.index_cast %5 : i32 to index
    %c0_16 = arith.constant 0 : index
    %73 = vector.load %arg1[%c9, %72, %c0_16] : memref<12x8x128xf32, #tpu.memory_space<vmem>>, vector<1x8x128xf32>
    %74 = vector.shape_cast %73 : vector<1x8x128xf32> to vector<8x128xf32>
    %c10 = arith.constant 10 : index
    %75 = arith.index_cast %5 : i32 to index
    %c0_17 = arith.constant 0 : index
    %76 = vector.load %arg1[%c10, %75, %c0_17] : memref<12x8x128xf32, #tpu.memory_space<vmem>>, vector<1x8x128xf32>
    %77 = vector.shape_cast %76 : vector<1x8x128xf32> to vector<8x128xf32>
    %c11 = arith.constant 11 : index
    %78 = arith.index_cast %5 : i32 to index
    %c0_18 = arith.constant 0 : index
    %79 = vector.load %arg1[%c11, %78, %c0_18] : memref<12x8x128xf32, #tpu.memory_space<vmem>>, vector<1x8x128xf32>
    %80 = vector.shape_cast %79 : vector<1x8x128xf32> to vector<8x128xf32>
    %81 = arith.subf %74, %17 : vector<8x128xf32>
    %82 = arith.subf %77, %20 : vector<8x128xf32>
    %83 = arith.subf %80, %23 : vector<8x128xf32>
    %84 = arith.mulf %69, %81 : vector<8x128xf32>
    %85 = arith.mulf %70, %82 : vector<8x128xf32>
    %86 = arith.addf %84, %85 : vector<8x128xf32>
    %87 = arith.mulf %71, %83 : vector<8x128xf32>
    %88 = arith.addf %86, %87 : vector<8x128xf32>
    %89 = arith.mulf %36, %71 : vector<8x128xf32>
    %90 = arith.mulf %37, %70 : vector<8x128xf32>
    %91 = arith.subf %89, %90 : vector<8x128xf32>
    %92 = arith.mulf %37, %69 : vector<8x128xf32>
    %93 = arith.mulf %35, %71 : vector<8x128xf32>
    %94 = arith.subf %92, %93 : vector<8x128xf32>
    %95 = arith.mulf %35, %70 : vector<8x128xf32>
    %96 = arith.mulf %36, %69 : vector<8x128xf32>
    %97 = arith.subf %95, %96 : vector<8x128xf32>
    %98 = arith.mulf %91, %81 : vector<8x128xf32>
    %99 = arith.mulf %94, %82 : vector<8x128xf32>
    %100 = arith.addf %98, %99 : vector<8x128xf32>
    %101 = arith.mulf %97, %83 : vector<8x128xf32>
    %102 = arith.addf %100, %101 : vector<8x128xf32>
    %103 = arith.mulf %102, %102 : vector<8x128xf32>
    %104 = arith.mulf %88, %88 : vector<8x128xf32>
    %105 = arith.addf %103, %104 : vector<8x128xf32>
    %cst_19 = arith.constant 9.99999971E-10 : f32
    %106 = vector.broadcast %cst_19 : f32 to vector<8x128xf32>
    %107 = arith.addf %105, %106 : vector<8x128xf32>
    %108 = math.rsqrt %107 : vector<8x128xf32>
    %109 = math.sqrt %105 : vector<8x128xf32>
    %110 = arith.mulf %109, %108 : vector<8x128xf32>
    %cst_20 = arith.constant 9.99999993E-9 : f32
    %111 = vector.broadcast %cst_20 : f32 to vector<8x128xf32>
    %112 = arith.addf %110, %111 : vector<8x128xf32>
    %113 = tpu.reciprocal %112 : vector<8x128xf32> -> vector<8x128xf32>
    %114 = arith.mulf %108, %113 : vector<8x128xf32>
    %115 = arith.mulf %102, %114 : vector<8x128xf32>
    %116 = arith.mulf %88, %114 : vector<8x128xf32>
    %117 = arith.cmpf one, %115, %115 : vector<8x128xf32>
    %118 = arith.cmpf one, %116, %116 : vector<8x128xf32>
    %119 = arith.ori %117, %118 : vector<8x128xi1>
    %cst_21 = arith.constant 0.000000e+00 : f32
    %cst_22 = arith.constant 1.000000e+00 : f32
    %120 = vector.broadcast %cst_21 : f32 to vector<8x128xf32>
    %121 = vector.broadcast %cst_22 : f32 to vector<8x128xf32>
    %122 = arith.select %119, %120, %121 : vector<8x128xi1>, vector<8x128xf32>
    %123 = arith.index_cast %5 : i32 to index
    %c0_23 = arith.constant 0 : index
    %124 = vector.load %arg2[%123, %c0_23] : memref<8x128xf32, #tpu.memory_space<vmem>>, vector<8x128xf32>
    %125 = math.absf %124 : vector<8x128xf32>
    %126 = arith.mulf %125, %122 : vector<8x128xf32>
    %cst_24 = arith.constant 0.000000e+00 : f32
    %127 = vector.broadcast %cst_24 : f32 to vector<8x128xf32>
    %128 = arith.cmpf olt, %124, %127 : vector<8x128xf32>
    %cst_25 = arith.constant -1.000000e+00 : f32
    %cst_26 = arith.constant 1.000000e+00 : f32
    %129 = vector.broadcast %cst_25 : f32 to vector<8x128xf32>
    %130 = vector.broadcast %cst_26 : f32 to vector<8x128xf32>
    %131 = arith.select %128, %129, %130 : vector<8x128xi1>, vector<8x128xf32>
    %132 = arith.index_cast %5 : i32 to index
    %c0_27 = arith.constant 0 : index
    %133 = vector.load %arg3[%132, %c0_27] : memref<8x128xf32, #tpu.memory_space<vmem>>, vector<8x128xf32>
    %134 = arith.index_cast %5 : i32 to index
    %c0_28 = arith.constant 0 : index
    %135 = vector.load %arg4[%134, %c0_28] : memref<8x128xf32, #tpu.memory_space<vmem>>, vector<8x128xf32>
    %136 = arith.mulf %133, %133 : vector<8x128xf32>
    %cst_29 = arith.constant 9.99999993E-9 : f32
    %137 = vector.broadcast %cst_29 : f32 to vector<8x128xf32>
    %138 = arith.addf %137, %136 : vector<8x128xf32>
    %139 = arith.mulf %135, %135 : vector<8x128xf32>
    %140 = arith.addf %138, %139 : vector<8x128xf32>
    %141 = math.sqrt %140 : vector<8x128xf32>
    %142 = tpu.reciprocal %141 : vector<8x128xf32> -> vector<8x128xf32>
    %143 = arith.mulf %133, %142 : vector<8x128xf32>
    %144 = arith.mulf %135, %142 : vector<8x128xf32>
    %145 = arith.subf %143, %115 : vector<8x128xf32>
    %146 = arith.mulf %145, %145 : vector<8x128xf32>
    %cst_30 = arith.constant 9.99999993E-9 : f32
    %147 = vector.broadcast %cst_30 : f32 to vector<8x128xf32>
    %148 = arith.addf %147, %146 : vector<8x128xf32>
    %149 = arith.subf %144, %116 : vector<8x128xf32>
    %150 = arith.mulf %149, %149 : vector<8x128xf32>
    %151 = arith.addf %148, %150 : vector<8x128xf32>
    %152 = arith.mulf %131, %115 : vector<8x128xf32>
    %153 = arith.subf %143, %152 : vector<8x128xf32>
    %154 = arith.mulf %153, %153 : vector<8x128xf32>
    %cst_31 = arith.constant 9.99999993E-9 : f32
    %155 = vector.broadcast %cst_31 : f32 to vector<8x128xf32>
    %156 = arith.addf %155, %154 : vector<8x128xf32>
    %157 = arith.mulf %131, %116 : vector<8x128xf32>
    %158 = arith.subf %144, %157 : vector<8x128xf32>
    %159 = arith.mulf %158, %158 : vector<8x128xf32>
    %160 = arith.addf %156, %159 : vector<8x128xf32>
    %161 = arith.minimumf %151, %160 : vector<8x128xf32>
    %c0_32 = arith.constant 0 : index
    %c0_33 = arith.constant 0 : index
    %c0_34 = arith.constant 0 : index
    %c0_35 = arith.constant 0 : index
    %162 = vector.load %arg5[%c0_32, %c0_33, %c0_34, %c0_35] : memref<1x3x8x128xf32, #tpu.memory_space<vmem>>, vector<1x1x8x128xf32>
    %163 = vector.shape_cast %162 : vector<1x1x8x128xf32> to vector<8x128xf32>
    %cst_36 = arith.constant 0.000000e+00 : f32
    %164 = vector.broadcast %cst_36 : f32 to vector<8x128xf32>
    %165 = arith.cmpf ogt, %126, %164 : vector<8x128xf32>
    %cst_37 = arith.constant 0.000000e+00 : f32
    %166 = vector.broadcast %cst_37 : f32 to vector<8x128xf32>
    %167 = arith.select %165, %161, %166 : vector<8x128xi1>, vector<8x128xf32>
    %168 = arith.addf %163, %167 : vector<8x128xf32>
    %c0_38 = arith.constant 0 : index
    %c0_39 = arith.constant 0 : index
    %c0_40 = arith.constant 0 : index
    %c0_41 = arith.constant 0 : index
    %169 = vector.load %arg5[%c0_38, %c0_39, %c0_40, %c0_41] : memref<1x3x8x128xf32, #tpu.memory_space<vmem>>, vector<1x1x8x128xf32>
    %170 = vector.shape_cast %169 : vector<1x1x8x128xf32> to vector<8x128xf32>
    %171 = vector.shape_cast %168 : vector<8x128xf32> to vector<1x1x8x128xf32>
    tpu.vector_store %arg5[%c0_38, %c0_39, %c0_40, %c0_41], %171 {strides = array<i32>} : memref<1x3x8x128xf32, #tpu.memory_space<vmem>>, vector<1x1x8x128xf32>,
    %c0_42 = arith.constant 0 : index
    %c1_43 = arith.constant 1 : index
    %c0_44 = arith.constant 0 : index
    %c0_45 = arith.constant 0 : index
    %172 = vector.load %arg5[%c0_42, %c1_43, %c0_44, %c0_45] : memref<1x3x8x128xf32, #tpu.memory_space<vmem>>, vector<1x1x8x128xf32>
    %173 = vector.shape_cast %172 : vector<1x1x8x128xf32> to vector<8x128xf32>
    %174 = arith.addf %173, %126 : vector<8x128xf32>
    %c0_46 = arith.constant 0 : index
    %c1_47 = arith.constant 1 : index
    %c0_48 = arith.constant 0 : index
    %c0_49 = arith.constant 0 : index
    %175 = vector.load %arg5[%c0_46, %c1_47, %c0_48, %c0_49] : memref<1x3x8x128xf32, #tpu.memory_space<vmem>>, vector<1x1x8x128xf32>
    %176 = vector.shape_cast %175 : vector<1x1x8x128xf32> to vector<8x128xf32>
    %177 = vector.shape_cast %174 : vector<8x128xf32> to vector<1x1x8x128xf32>
    tpu.vector_store %arg5[%c0_46, %c1_47, %c0_48, %c0_49], %177 {strides = array<i32>} : memref<1x3x8x128xf32, #tpu.memory_space<vmem>>, vector<1x1x8x128xf32>,
    %c0_50 = arith.constant 0 : index
    %c2_51 = arith.constant 2 : index
    %c0_52 = arith.constant 0 : index
    %c0_53 = arith.constant 0 : index
    %178 = vector.load %arg5[%c0_50, %c2_51, %c0_52, %c0_53] : memref<1x3x8x128xf32, #tpu.memory_space<vmem>>, vector<1x1x8x128xf32>
    %179 = vector.shape_cast %178 : vector<1x1x8x128xf32> to vector<8x128xf32>
    %cst_54 = arith.constant 1.000000e+00 : f32
    %180 = vector.broadcast %cst_54 : f32 to vector<8x128xf32>
    %181 = arith.subf %141, %180 : vector<8x128xf32>
    %182 = arith.mulf %181, %181 : vector<8x128xf32>
    %183 = arith.addf %179, %182 : vector<8x128xf32>
    %c0_55 = arith.constant 0 : index
    %c2_56 = arith.constant 2 : index
    %c0_57 = arith.constant 0 : index
    %c0_58 = arith.constant 0 : index
    %184 = vector.load %arg5[%c0_55, %c2_56, %c0_57, %c0_58] : memref<1x3x8x128xf32, #tpu.memory_space<vmem>>, vector<1x1x8x128xf32>
    %185 = vector.shape_cast %184 : vector<1x1x8x128xf32> to vector<8x128xf32>
    %186 = vector.shape_cast %183 : vector<8x128xf32> to vector<1x1x8x128xf32>
    tpu.vector_store %arg5[%c0_55, %c2_56, %c0_57, %c0_58], %186 {strides = array<i32>} : memref<1x3x8x128xf32, #tpu.memory_space<vmem>>, vector<1x1x8x128xf32>,
    %c1_i32_59 = arith.constant 1 : i32
    return
  }
  func.func @transform_0(%arg0: i32) -> (i32, i32, i32) {
    %c0_i32 = arith.constant 0 : i32
    %c0_i32_0 = arith.constant 0 : i32
    %c0_i32_1 = arith.constant 0 : i32
    return %c0_i32, %arg0, %c0_i32_0 : i32, i32, i32
  }
  func.func @transform_1(%arg0: i32) -> (i32, i32) {
    %c0_i32 = arith.constant 0 : i32
    %c0_i32_0 = arith.constant 0 : i32
    return %arg0, %c0_i32 : i32, i32
  }
  func.func @transform_2(%arg0: i32) -> (i32, i32) {
    %c0_i32 = arith.constant 0 : i32
    %c0_i32_0 = arith.constant 0 : i32
    return %arg0, %c0_i32 : i32, i32
  }
  func.func @transform_3(%arg0: i32) -> (i32, i32) {
    %c0_i32 = arith.constant 0 : i32
    %c0_i32_0 = arith.constant 0 : i32
    return %arg0, %c0_i32 : i32, i32
  }
  func.func @transform_4(%arg0: i32) -> (i32, i32, i32, i32) {
    %c0_i32 = arith.constant 0 : i32
    %c0_i32_0 = arith.constant 0 : i32
    %c0_i32_1 = arith.constant 0 : i32
    %c0_i32_2 = arith.constant 0 : i32
    return %arg0, %c0_i32, %c0_i32_0, %c0_i32_1 : i32, i32, i32, i32
  }
}

</mosaic_0001>

<llo_original>
// kernel: squeeze.6
$region0: #{squeeze.6}
  %s0 = inlined_call_operand.vmem [shape: f32[2,8,4,1], index: 0, kind: input, shape index: {}]
  %s1 = inlined_call_operand.vmem [shape: f32[64], index: 1, kind: output, shape index: {}]
  $region1: #{squeeze.6} parent=0
    #allocation0 [shape = 'u8[4096]{0}', space=vmem, size = 0x1000, scoped, tag = 'scoped mem for output reshape']
    %v2 = vld [vmem:[%s0] sm:$0x1]
    %vm3 = vcmask 31744
    %4 = vst.msk [vmem:[#allocation0] sm:$0x1] %vm3, %v2
    %s5 = scalar_lea.vmem %s0, 15
    %v6 = vld [vmem:[%s5] sm:$0x1]
    %7 = vrot.lane.b32.xlu0 %v6, 60
    %v8 = vpop.permute.xlu0 %7
    %vm9 = vcmask 523744
    %10 = vst.msk [vmem:[#allocation0] sm:$0x1] %vm9, %v8
    %s11 = scalar_lea.vmem %s0, 14
    %v12 = vld [vmem:[%s11] sm:$0x1]
    %13 = vrot.lane.b32.xlu0 %v12, 56
    %v14 = vpop.permute.xlu0 %13
    %vm15 = vcmask 490944
    %16 = vst.msk [vmem:[#allocation0] sm:$0x1] %vm15, %v14
    %s17 = scalar_lea.vmem %s0, 13
    %v18 = vld [vmem:[%s17] sm:$0x1]
    %19 = vrot.lane.b32.xlu0 %v18, 52
    %v20 = vpop.permute.xlu0 %19
    %vm21 = vcmask 458144
    %22 = vst.msk [vmem:[#allocation0] sm:$0x1] %vm21, %v20
    %s23 = scalar_lea.vmem %s0, 12
    %v24 = vld [vmem:[%s23] sm:$0x1]
    %25 = vrot.lane.b32.xlu0 %v24, 48
    %v26 = vpop.permute.xlu0 %25
    %vm27 = vcmask 425344
    %28 = vst.msk [vmem:[#allocation0] sm:$0x1] %vm27, %v26
    %s29 = scalar_lea.vmem %s0, 11
    %v30 = vld [vmem:[%s29] sm:$0x1]
    %31 = vrot.lane.b32.xlu0 %v30, 44
    %v32 = vpop.permute.xlu0 %31
    %vm33 = vcmask 392544
    %34 = vst.msk [vmem:[#allocation0] sm:$0x1] %vm33, %v32
    %s35 = scalar_lea.vmem %s0, 10
    %v36 = vld [vmem:[%s35] sm:$0x1]
    %37 = vrot.lane.b32.xlu0 %v36, 40
    %v38 = vpop.permute.xlu0 %37
    %vm39 = vcmask 359744
    %40 = vst.msk [vmem:[#allocation0] sm:$0x1] %vm39, %v38
    %s41 = scalar_lea.vmem %s0, 9
    %v42 = vld [vmem:[%s41] sm:$0x1]
    %43 = vrot.lane.b32.xlu0 %v42, 36
    %v44 = vpop.permute.xlu0 %43
    %vm45 = vcmask 326944
    %46 = vst.msk [vmem:[#allocation0] sm:$0x1] %vm45, %v44
    %s47 = scalar_lea.vmem %s0, 8
    %v48 = vld [vmem:[%s47] sm:$0x1]
    %49 = vrot.lane.b32.xlu0 %v48, 32
    %v50 = vpop.permute.xlu0 %49
    %vm51 = vcmask 294144
    %52 = vst.msk [vmem:[#allocation0] sm:$0x1] %vm51, %v50
    %s53 = scalar_lea.vmem %s0, 7
    %v54 = vld [vmem:[%s53] sm:$0x1]
    %55 = vrot.lane.b32.xlu0 %v54, 28
    %v56 = vpop.permute.xlu0 %55
    %vm57 = vcmask 261344
    %58 = vst.msk [vmem:[#allocation0] sm:$0x1] %vm57, %v56
    %s59 = scalar_lea.vmem %s0, 6
    %v60 = vld [vmem:[%s59] sm:$0x1]
    %61 = vrot.lane.b32.xlu0 %v60, 24
    %v62 = vpop.permute.xlu0 %61
    %vm63 = vcmask 228544
    %64 = vst.msk [vmem:[#allocation0] sm:$0x1] %vm63, %v62
    %s65 = scalar_lea.vmem %s0, 5
    %v66 = vld [vmem:[%s65] sm:$0x1]
    %67 = vrot.lane.b32.xlu0 %v66, 20
    %v68 = vpop.permute.xlu0 %67
    %vm69 = vcmask 195744
    %70 = vst.msk [vmem:[#allocation0] sm:$0x1] %vm69, %v68
    %s71 = scalar_lea.vmem %s0, 4
    %v72 = vld [vmem:[%s71] sm:$0x1]
    %73 = vrot.lane.b32.xlu0 %v72, 16
    %v74 = vpop.permute.xlu0 %73
    %vm75 = vcmask 162944
    %76 = vst.msk [vmem:[#allocation0] sm:$0x1] %vm75, %v74
    %s77 = scalar_lea.vmem %s0, 3
    %v78 = vld [vmem:[%s77] sm:$0x1]
    %79 = vrot.lane.b32.xlu0 %v78, 12
    %v80 = vpop.permute.xlu0 %79
    %vm81 = vcmask 130144
    %82 = vst.msk [vmem:[#allocation0] sm:$0x1] %vm81, %v80
    %s83 = scalar_lea.vmem %s0, 2
    %v84 = vld [vmem:[%s83] sm:$0x1]
    %85 = vrot.lane.b32.xlu0 %v84, 8
    %v86 = vpop.permute.xlu0 %85
    %vm87 = vcmask 97344
    %88 = vst.msk [vmem:[#allocation0] sm:$0x1] %vm87, %v86
    %s89 = scalar_lea.vmem %s0, 1
    %v90 = vld [vmem:[%s89] sm:$0x1]
    %91 = vrot.lane.b32.xlu0 %v90, 4
    %v92 = vpop.permute.xlu0 %91
    %vm93 = vcmask 64544
    %94 = vst.msk [vmem:[#allocation0] sm:$0x1] %vm93, %v92
    %s96 = sshllo.u32 0, 1
    %v98 = vld [vmem:[#allocation0] sm:%s96]
    %s99 = sshllo.u32 0, 1
    %100 = vst [vmem:[%s1] sm:%s99] %v98

// kernel: side_chain_dihedral_loss.1
$region0: #{side_chain_dihedral_loss.1}
  #allocation0 [shape = 'u32[]', space=smem, size = 0x4, offset = 0x4, fixed_abs, tag = 'smem constant byte address 0x4 - core index']
  #allocation1 [shape = 'u32[144,128]{1,0:T(1,128)}', space=vmem, size = 0x12000, scoped, tag = 'internal scratch']
  %s0 = inlined_call_operand.vmem [shape: f32[12,8,128], index: 0, kind: input, shape index: {}]
  %s1 = inlined_call_operand.vmem [shape: f32[8,128], index: 1, kind: input, shape index: {}]
  %s2 = inlined_call_operand.vmem [shape: f32[8,128], index: 2, kind: input, shape index: {}]
  %s3 = inlined_call_operand.vmem [shape: f32[8,128], index: 3, kind: input, shape index: {}]
  %s4 = inlined_call_operand.vmem [shape: f32[1,3,8,128], index: 4, kind: output, shape index: {}]
  %s5 = sld [smem:[#allocation0]]
  $region26: #{side_chain_dihedral_loss.1} parent=0
    _
  %s7 = ssub.s32 1, %s5
  %s8 = scalar_select 0, %s7, %s5
  // Predicated region
  $region2: #{side_chain_dihedral_loss.1} parent=0 // pred_check
    _
  $region3: #{side_chain_dihedral_loss.1} parent=0 // pred_check_branch
    %10 = sbr.rel (0) target = $region5
  $region4: #{side_chain_dihedral_loss.1} parent=0 // pred_region
    _
  $region5: #{side_chain_dihedral_loss.1} parent=0 // pred_fallthru
    _
  // Predicated region
  $region6: #{side_chain_dihedral_loss.1} parent=0 // pred_check
    _
  $region7: #{side_chain_dihedral_loss.1} parent=0 // pred_check_branch
    %12 = sbr.rel (0) target = $region9
  $region8: #{side_chain_dihedral_loss.1} parent=0 // pred_region
    _
  $region9: #{side_chain_dihedral_loss.1} parent=0 // pred_fallthru
    _
  // Predicated region
  $region10: #{side_chain_dihedral_loss.1} parent=0 // pred_check
    _
  $region11: #{side_chain_dihedral_loss.1} parent=0 // pred_check_branch
    %14 = sbr.rel (0) target = $region13
  $region12: #{side_chain_dihedral_loss.1} parent=0 // pred_region
    _
  $region13: #{side_chain_dihedral_loss.1} parent=0 // pred_fallthru
    _
  // Predicated region
  $region14: #{side_chain_dihedral_loss.1} parent=0 // pred_check
    _
  $region15: #{side_chain_dihedral_loss.1} parent=0 // pred_check_branch
    %16 = sbr.rel (0) target = $region17
  $region16: #{side_chain_dihedral_loss.1} parent=0 // pred_region
    _
  $region17: #{side_chain_dihedral_loss.1} parent=0 // pred_fallthru
    _
  %17 = vst [vmem:[%s4] sm:$0xff] 0.0
  %18 = vst [vmem:[%s4 + $0x8] sm:$0xff] 0.0
  %19 = vst [vmem:[%s4 + $0x10] sm:$0xff] 0.0
  %s20 = sadd.s32 0, 24
  %s21 = scalar_lea.vmem %s0, %s20
  %v22 = vld [vmem:[%s21] sm:$0xff]
  %s23 = sadd.s32 0, 32
  %s24 = scalar_lea.vmem %s0, %s23
  %v25 = vld [vmem:[%s24] sm:$0xff]
  %s26 = sadd.s32 0, 40
  %s27 = scalar_lea.vmem %s0, %s26
  %v28 = vld [vmem:[%s27] sm:$0xff]
  %s29 = sadd.s32 0, 48
  %s30 = scalar_lea.vmem %s0, %s29
  %v31 = vld [vmem:[%s30] sm:$0xff]
  %s32 = sadd.s32 0, 56
  %s33 = scalar_lea.vmem %s0, %s32
  %v34 = vld [vmem:[%s33] sm:$0xff]
  %s35 = sadd.s32 0, 64
  %s36 = scalar_lea.vmem %s0, %s35
  %v37 = vld [vmem:[%s36] sm:$0xff]
  %v38 = vsub.f32 %v31, %v22
  %v39 = vsub.f32 %v34, %v25
  %v40 = vsub.f32 %v37, %v28
  %v41 = vmul.f32 %v38, %v38
  %v42 = vmul.f32 %v39, %v39
  %v43 = vadd.f32 %v41, %v42
  %v44 = vmul.f32 %v40, %v40
  %v45 = vadd.f32 %v43, %v44
  %v46 = vadd.f32 %v45, 1e-08
  %v47 = vrsqrt.pop %v46
  %v48 = vmul.f32 %v38, %v47
  %v49 = vmul.f32 %v39, %v47
  %v50 = vmul.f32 %v40, %v47
  %v51 = vld [vmem:[%s0] sm:$0xff]
  %s52 = sadd.s32 0, 8
  %s53 = scalar_lea.vmem %s0, %s52
  %v54 = vld [vmem:[%s53] sm:$0xff]
  %s55 = sadd.s32 0, 16
  %s56 = scalar_lea.vmem %s0, %s55
  %v57 = vld [vmem:[%s56] sm:$0xff]
  %v58 = vsub.f32 %v51, %v31
  %v59 = vsub.f32 %v54, %v34
  %v60 = vsub.f32 %v57, %v37
  %v61 = vmul.f32 %v48, %v58
  %v62 = vmul.f32 %v49, %v59
  %v63 = vadd.f32 %v61, %v62
  %v64 = vmul.f32 %v50, %v60
  %v65 = vadd.f32 %v63, %v64
  %v66 = vmul.f32 %v48, %v65
  %v67 = vmul.f32 %v49, %v65
  %v68 = vmul.f32 %v50, %v65
  %v69 = vsub.f32 %v58, %v66
  %v70 = vsub.f32 %v59, %v67
  %v71 = vsub.f32 %v60, %v68
  %v72 = vmul.f32 %v69, %v69
  %v73 = vmul.f32 %v70, %v70
  %v74 = vadd.f32 %v72, %v73
  %v75 = vmul.f32 %v71, %v71
  %v76 = vadd.f32 %v74, %v75
  %v77 = vadd.f32 %v76, 1e-08
  %v78 = vrsqrt.pop %v77
  %v79 = vmul.f32 %v69, %v78
  %v80 = vmul.f32 %v70, %v78
  %v81 = vmul.f32 %v71, %v78
  %s82 = sadd.s32 0, 72
  %s83 = scalar_lea.vmem %s0, %s82
  %v84 = vld [vmem:[%s83] sm:$0xff]
  %s85 = sadd.s32 0, 80
  %s86 = scalar_lea.vmem %s0, %s85
  %v87 = vld [vmem:[%s86] sm:$0xff]
  %s88 = sadd.s32 0, 88
  %s89 = scalar_lea.vmem %s0, %s88
  %v90 = vld [vmem:[%s89] sm:$0xff]
  %v91 = vsub.f32 %v84, %v31
  %v92 = vsub.f32 %v87, %v34
  %v93 = vsub.f32 %v90, %v37
  %v94 = vmul.f32 %v79, %v91
  %v95 = vmul.f32 %v80, %v92
  %v96 = vadd.f32 %v94, %v95
  %v97 = vmul.f32 %v81, %v93
  %v98 = vadd.f32 %v96, %v97
  %v99 = vmul.f32 %v49, %v81
  %v100 = vmul.f32 %v50, %v80
  %v101 = vsub.f32 %v99, %v100
  %v102 = vmul.f32 %v50, %v79
  %v103 = vmul.f32 %v48, %v81
  %v104 = vsub.f32 %v102, %v103
  %v105 = vmul.f32 %v48, %v80
  %v106 = vmul.f32 %v49, %v79
  %v107 = vsub.f32 %v105, %v106
  %v108 = vmul.f32 %v101, %v91
  %v109 = vmul.f32 %v104, %v92
  %v110 = vadd.f32 %v108, %v109
  %v111 = vmul.f32 %v107, %v93
  %v112 = vadd.f32 %v110, %v111
  %v113 = vmul.f32 %v112, %v112
  %v114 = vmul.f32 %v98, %v98
  %v115 = vadd.f32 %v113, %v114
  %v116 = vadd.f32 %v115, 1e-09
  %v117 = vrsqrt.pop %v116
  %v118 = vrsqrt.pop %v115
  %v119 = vmul.f32 %v115, %v118
  %vm120 = vcmp.eq.f32.partialorder %v115, inf
  %v121 = vsel %vm120, %v115, %v119
  %vm122 = vcmp.eq.f32.partialorder %v115, 0.0
  %v123 = vand.u32 %v115, 2147483648
  %v124 = vsel %vm122, %v123, %v121
  %v125 = vmul.f32 %v124, %v117
  %v126 = vadd.f32 %v125, 1e-08
  %v127 = vrcp.pop %v126
  %v128 = vmul.f32 %v117, %v127
  %v129 = vmul.f32 %v112, %v128
  %v130 = vmul.f32 %v98, %v128
  %vm131 = vcmp.ne.f32.partialorder %v129, %v129
  %vm132 = vcmp.ne.f32.partialorder %v130, %v130
  %vm133 = vmor %vm131, %vm132
  %v134 = vsel %vm133, 0.0, 1.0
  %v135 = vld [vmem:[%s1] sm:$0xff]
  %v136 = vand.u32 2147483647, %v135
  %v137 = vmul.f32 %v136, %v134
  %vm138 = vcmp.lt.f32.partialorder %v135, 0.0
  %v139 = vsel %vm138, -1.0, 1.0
  %v140 = vld [vmem:[%s2] sm:$0xff]
  %v141 = vld [vmem:[%s3] sm:$0xff]
  %v142 = vmul.f32 %v140, %v140
  %v143 = vadd.f32 %v142, 1e-08
  %v144 = vmul.f32 %v141, %v141
  %v145 = vadd.f32 %v143, %v144
  %v146 = vrsqrt.pop %v145
  %v147 = vmul.f32 %v145, %v146
  %vm148 = vcmp.eq.f32.partialorder %v145, inf
  %v149 = vsel %vm148, %v145, %v147
  %vm150 = vcmp.eq.f32.partialorder %v145, 0.0
  %v151 = vand.u32 %v145, 2147483648
  %v152 = vsel %vm150, %v151, %v149
  %v153 = vrcp.pop %v152
  %v154 = vmul.f32 %v140, %v153
  %v155 = vmul.f32 %v141, %v153
  %v156 = vsub.f32 %v154, %v129
  %v157 = vmul.f32 %v156, %v156
  %v158 = vadd.f32 %v157, 1e-08
  %v159 = vsub.f32 %v155, %v130
  %v160 = vmul.f32 %v159, %v159
  %v161 = vadd.f32 %v158, %v160
  %v162 = vmul.f32 %v139, %v129
  %v163 = vsub.f32 %v154, %v162
  %v164 = vmul.f32 %v163, %v163
  %v165 = vadd.f32 %v164, 1e-08
  %v166 = vmul.f32 %v139, %v130
  %v167 = vsub.f32 %v155, %v166
  %v168 = vmul.f32 %v167, %v167
  %v169 = vadd.f32 %v165, %v168
  %v170 = vmin.f32 %v161, %v169
  %v171 = vld [vmem:[%s4] sm:$0xff]
  %vm172 = vcmp.gt.f32.partialorder %v137, 0.0
  %v173 = vsel %vm172, %v170, 0.0
  %v174 = vadd.f32 %v171, %v173
  %175 = vst [vmem:[%s4] sm:$0xff] %v174
  %s176 = scalar_lea.vmem %s4, 8
  %v177 = vld [vmem:[%s176] sm:$0xff]
  %v178 = vadd.f32 %v177, %v137
  %179 = vst [vmem:[%s176] sm:$0xff] %v178
  %s180 = scalar_lea.vmem %s4, 16
  %v181 = vld [vmem:[%s180] sm:$0xff]
  %v182 = vsub.f32 %v152, 1.0
  %v183 = vmul.f32 %v182, %v182
  %v184 = vadd.f32 %v181, %v183
  %185 = vst [vmem:[%s180] sm:$0xff] %v184
  // Predicated region
  $region18: #{side_chain_dihedral_loss.1} parent=0 // pred_check
    _
  $region19: #{side_chain_dihedral_loss.1} parent=0 // pred_check_branch
    %187 = sbr.rel (0) target = $region21
  $region20: #{side_chain_dihedral_loss.1} parent=0 // pred_region
    _
  $region21: #{side_chain_dihedral_loss.1} parent=0 // pred_fallthru
    _
  // Predicated region
  $region22: #{side_chain_dihedral_loss.1} parent=0 // pred_check
    _
  $region23: #{side_chain_dihedral_loss.1} parent=0 // pred_check_branch
    %189 = sbr.rel (0) target = $region25
  $region24: #{side_chain_dihedral_loss.1} parent=0 // pred_region
    _
  $region25: #{side_chain_dihedral_loss.1} parent=0 // pred_fallthru
    _

</llo_original>
